<compile_context>
chip_gen: v6e
topology: v6e:2x2x1
jax: 0.10.0
libtpu: 0.0.40
codegen_flags: <defaults>
</compile_context>

<pallas_src>
import functools

import jax
import jax.numpy as jnp
from jax.experimental import pallas as pl
from jax.experimental.pallas import tpu as pltpu


def _cdiv(a, b):
    return (a + b - 1) // b


def _round_up(x, m):
    return _cdiv(x, m) * m


_VMEM_BUDGET = 40 << 20        # v7x-safe working-set budget used for tile sizing
_VMEM_LIMIT_CAP = 56 << 20     # never ask for more scoped VMEM than v7x can give


# ----------------------------------------------------------------------------
# Kernel 1: fused  x @ W_all + b_all  followed by per-head activations.
# ----------------------------------------------------------------------------
def _fused_heads_kernel(x_ref, w_ref, b_ref, *out_refs, head_acts, dout):
    x = x_ref[...]                               # (T, Din)      bf16 -> MXU
    w = w_ref[...]                               # (Din, H*Dout) bf16
    b = b_ref[...].astype(jnp.float32)           # (1, H*Dout)   f32

    # One wide MXU matmul for every head; f32 accumulation.
    y = jnp.dot(x, w, preferred_element_type=jnp.float32) + b   # (T, H*Dout)

    for h, act in enumerate(head_acts):
        yh = y[:, h * dout:(h + 1) * dout]
        if act == "softmax":                      # per-row softmax (dim=-1)
            yh = yh - jnp.max(yh, axis=-1, keepdims=True)
            e = jnp.exp(yh)
            yh = e / jnp.sum(e, axis=-1, keepdims=True)
        elif act == "softmax_dim0":               # detector softmax (dim=0), fused
            yh = yh - jnp.max(yh, axis=0, keepdims=True)
            e = jnp.exp(yh)
            yh = e / jnp.sum(e, axis=0, keepdims=True)
        elif act == "sigmoid":
            yh = jax.nn.sigmoid(yh)
        elif act == "none":                       # raw logits (dim-0 softmax later)
            pass
        else:
            raise ValueError(f"unknown act: {act}")
        out_refs[h][...] = yh.astype(out_refs[h].dtype)


# ----------------------------------------------------------------------------
# Kernel 2: softmax over dim=0 (detector head) — multi-tile fallback only.
# ----------------------------------------------------------------------------
def _softmax_dim0_kernel(x_ref, o_ref):
    y = x_ref[...].astype(jnp.float32)
    y = y - jnp.max(y, axis=0, keepdims=True)
    e = jnp.exp(y)
    o_ref[...] = (e / jnp.sum(e, axis=0, keepdims=True)).astype(o_ref.dtype)


# ----------------------------------------------------------------------------
# Parameters (mimics nn.Linear default init; weights stored transposed)
# ----------------------------------------------------------------------------
def _init_linear(key, dim_in, dim_out, dtype=jnp.float32):
    kw, kb = jax.random.split(key)
    bound = 1.0 / (dim_in ** 0.5)
    w = jax.random.uniform(kw, (dim_in, dim_out), dtype, -bound, bound)
    b = jax.random.uniform(kb, (dim_out,), dtype, -bound, bound)
    return w, b


def make_params(key, dim_in, dim_out, refine_times):
    keys = jax.random.split(key, 2 + 2 * refine_times)
    return {
        "classifier": _init_linear(keys[0], dim_in, dim_out),
        "detector": _init_linear(keys[1], dim_in, dim_out),
        "refine_cls": [_init_linear(keys[2 + i], dim_in, dim_out)
                       for i in range(refine_times)],
        "refine_iou": [_init_linear(keys[2 + refine_times + i], dim_in, dim_out)
                       for i in range(refine_times)],
    }


def fuse_params(params, dim_out, compute_dtype=jnp.bfloat16):
    """Concatenate all head weights along Dout; cast operands to bf16 for MXU."""
    heads = [(params["classifier"], "softmax"),
             (params["detector"], "det")]
    for (wc, bc), (wi, bi) in zip(params["refine_cls"], params["refine_iou"]):
        heads.append(((wc, bc), "softmax"))
        heads.append(((wi, bi), "sigmoid"))

    w_all = jnp.concatenate([w for (w, _), _ in heads], axis=1)      # (Din, H*Dout)
    b_all = jnp.concatenate([b for (_, b), _ in heads], axis=0).reshape(1, -1)
    return {
        "w_all": w_all.astype(compute_dtype),
        # bias stays f32 (negligible bytes, added after f32 accumulation)
        "b_all": b_all.astype(jnp.float32),
        "head_acts": tuple(a for _, a in heads),
        "dout": dim_out,
    }


# ----------------------------------------------------------------------------
# Forward pass (matches cls_iou_model.forward semantics)
# ----------------------------------------------------------------------------
def cls_iou_forward(fused, seg_feature, *, tile_n=4096):
    if seg_feature.ndim == 4:
        seg_feature = seg_feature[:, :, 0, 0]
    n, din = seg_feature.shape
    w_all, b_all = fused["w_all"], fused["b_all"]
    head_acts, dout = fused["head_acts"], fused["dout"]
    n_heads = len(head_acts)
    total = w_all.shape[1]
    out_dtype = seg_feature.dtype

    x = seg_feature.astype(w_all.dtype)           # bf16 operands, f32 accumulate
    x_item = jnp.dtype(x.dtype).itemsize

    # ---- tile sizing: biggest N-tile that fits a v7x-safe VMEM budget -------
    per_row = 2 * din * x_item + 2 * n_heads * dout * 4       # double-buffered
    w_bytes = din * total * jnp.dtype(w_all.dtype).itemsize + total * 4
    t_budget = max(8, ((_VMEM_BUDGET - 2 * w_bytes) // per_row) // 8 * 8)
    tile_cap = max(8, min(tile_n, t_budget))

    single_tile = n <= tile_cap
    if single_tile:
        # One grid step: full-array blocks -> no padding, no post-slicing, and
        # the detector dim-0 softmax is fused into the same kernel launch.
        tile, n_pad = n, n
        acts = tuple("softmax_dim0" if a == "det" else a for a in head_acts)
        x_in = x
        out_dtypes = [out_dtype] * n_heads
    else:
        # Balance padding waste: last tile wastes at most one sublane group.
        n_tiles = _cdiv(n, tile_cap)
        tile = _round_up(_cdiv(n, n_tiles), 8)
        n_pad = _round_up(n, tile)
        acts = tuple("none" if a == "det" else a for a in head_acts)
        x_in = jnp.pad(x, ((0, n_pad - n), (0, 0)))
        out_dtypes = [out_dtype] * n_heads
        # keep raw detector logits in f32 for the second (dim-0 softmax) pass
        out_dtypes[head_acts.index("det")] = jnp.float32

    grid = (n_pad // tile,)

    # Grid-invariant weights/bias: skip double-buffering them when they matter.
    w_kwargs = {}
    if (not single_tile) and w_bytes > (4 << 20):
        w_kwargs = dict(pipeline_mode=pl.Buffered(1))
    w_spec = pl.BlockSpec((din, total), lambda i: (0, 0), **w_kwargs)
    b_spec = pl.BlockSpec((1, total), lambda i: (0, 0), **w_kwargs)

    needed = (2 * tile * din * x_item
              + 2 * n_heads * tile * dout * 4
              + 2 * w_bytes)
    vmem_limit = int(min(max(2 * needed + (8 << 20), 32 << 20), _VMEM_LIMIT_CAP))

    outs = pl.pallas_call(
        functools.partial(_fused_heads_kernel, head_acts=acts, dout=dout),
        out_shape=tuple(jax.ShapeDtypeStruct((n_pad, dout), dt)
                        for dt in out_dtypes),
        grid=grid,
        in_specs=[
            pl.BlockSpec((tile, din), lambda i: (i, 0)),     # x tiles stream
            w_spec,                                          # resident weights
            b_spec,                                          # resident bias
        ],
        out_specs=tuple(pl.BlockSpec((tile, dout), lambda i: (i, 0))
                        for _ in range(n_heads)),
        # TODO(synk): on v7x, switch to pltpu.CORE_PARALLEL / pl.core_map with a
        # >=2-step grid to engage both TensorCores; "parallel" is correct on all
        # generations and the chip type is not known here.
        compiler_params=pltpu.CompilerParams(
            dimension_semantics=("parallel",),
            vmem_limit_bytes=vmem_limit),
    )(x_in, w_all, b_all)

    outs = list(outs)
    if not single_tile:
        outs = [o[:n] for o in outs]
        det_idx = head_acts.index("det")
        # Detector head: softmax across rows (dim=0) needs every row -> 2nd pass.
        # TODO(synk): for very large N replace this single-block pass with a
        # tiled two-pass (column max, then sum/normalize) reduction.
        needed2 = 4 * n * dout * 4 * 2
        outs[det_idx] = pl.pallas_call(
            _softmax_dim0_kernel,
            out_shape=jax.ShapeDtypeStruct((n, dout), out_dtype),
            grid=(1,),
            in_specs=[pl.BlockSpec((n, dout), lambda i: (0, 0))],
            out_specs=pl.BlockSpec((n, dout), lambda i: (0, 0)),
            compiler_params=pltpu.CompilerParams(
                dimension_semantics=("arbitrary",),
                vmem_limit_bytes=int(min(max(needed2, 32 << 20),
                                         _VMEM_LIMIT_CAP))),
        )(outs[det_idx])

    predict_cls = outs[0]
    predict_det = outs[1]
    n_refine = (n_heads - 2) // 2
    refine_cls_score = [outs[2 + 2 * r] for r in range(n_refine)]
    refine_iou_score = [outs[3 + 2 * r] for r in range(n_refine)]
    return predict_cls, predict_det, refine_cls_score, refine_iou_score


# ----------------------------------------------------------------------------
# Plain-JAX f32 reference for a sanity check
# ----------------------------------------------------------------------------
def cls_iou_forward_ref(params, seg_feature):
    if seg_feature.ndim == 4:
        seg_feature = seg_feature[:, :, 0, 0]
    x = seg_feature.astype(jnp.float32)

    def lin(pair):
        w, b = pair
        return x @ w.astype(jnp.float32) + b.astype(jnp.float32)

    predict_cls = jax.nn.softmax(lin(params["classifier"]), axis=-1)
    predict_det = jax.nn.softmax(lin(params["detector"]), axis=0)
    rc = [jax.nn.softmax(lin(p), axis=-1) for p in params["refine_cls"]]
    ri = [jax.nn.sigmoid(lin(p)) for p in params["refine_iou"]]
    return predict_cls, predict_det, rc, ri


def _check(out, ref, atol=1e-2):   # atol widened for bf16 operands vs f32 ref
    pc, pd, rc, ri = out
    rpc, rpd, rrc, rri = ref
    assert jnp.allclose(pc, rpc, atol=atol), "classifier head mismatch"
    assert jnp.allclose(pd, rpd, atol=atol), "detector head mismatch"
    for a, b in zip(rc, rrc):
        assert jnp.allclose(a, b, atol=atol), "refine_cls head mismatch"
    for a, b in zip(ri, rri):
        assert jnp.allclose(a, b, atol=atol), "refine_iou head mismatch"


if __name__ == "__main__":
    key = jax.random.PRNGKey(0)
    k_param, k_x1, k_x2 = jax.random.split(key, 3)

    dim_in, dim_out, refine_times = 32, 16, 2
    params = make_params(k_param, dim_in, dim_out, refine_times)
    fused = fuse_params(params, dim_out)

    # Case 1: small N, 4D NCHW (1x1 spatial) input -> single fused kernel
    # (detector dim-0 softmax fused, no padding, no second launch).
    x1 = jax.random.normal(k_x1, (8, dim_in, 1, 1), dtype=jnp.float32)
    fwd1 = jax.jit(functools.partial(cls_iou_forward, fused))
    out1 = jax.block_until_ready(fwd1(x1))
    _check(out1, cls_iou_forward_ref(params, x1))

    # Case 2: larger N with a small tile cap -> exercises the multi-tile grid,
    # row padding, and the second-pass dim-0 softmax kernel.
    x2 = jax.random.normal(k_x2, (300, dim_in), dtype=jnp.float32)
    fwd2 = jax.jit(functools.partial(cls_iou_forward, fused, tile_n=128))
    out2 = jax.block_until_ready(fwd2(x2))
    _check(out2, cls_iou_forward_ref(params, x2))

    print("KERNEL_OK")
</pallas_src>

<mosaic_0001>
module attributes {stable_mosaic.version = 11 : i64} {
  func.func @_fused_heads_kernel(%arg0: i32, %arg1: memref<8x32xbf16, #tpu.memory_space<vmem>>, %arg2: memref<32x96xbf16, #tpu.memory_space<vmem>>, %arg3: memref<1x96xf32, #tpu.memory_space<vmem>>, %arg4: memref<8x16xf32, #tpu.memory_space<vmem>>, %arg5: memref<8x16xf32, #tpu.memory_space<vmem>>, %arg6: memref<8x16xf32, #tpu.memory_space<vmem>>, %arg7: memref<8x16xf32, #tpu.memory_space<vmem>>, %arg8: memref<8x16xf32, #tpu.memory_space<vmem>>, %arg9: memref<8x16xf32, #tpu.memory_space<vmem>>) attributes {dimension_semantics = [#tpu.dimension_semantics<parallel>], iteration_bounds = array<i64: 1>, scalar_prefetch = 0 : i64, scratch_operands = 0 : i64, tpu.core_type = #tpu.core_type<tc>, window_params = [{transform_indices = @transform_0, window_bounds = array<i64: 8, 32>}, {pipeline_mode = #tpu.pipeline_mode<synchronous>, transform_indices = @transform_1, window_bounds = array<i64: 32, 96>}, {pipeline_mode = #tpu.pipeline_mode<synchronous>, transform_indices = @transform_2, window_bounds = array<i64: 1, 96>}, {transform_indices = @transform_3, window_bounds = array<i64: 8, 16>}, {transform_indices = @transform_4, window_bounds = array<i64: 8, 16>}, {transform_indices = @transform_5, window_bounds = array<i64: 8, 16>}, {transform_indices = @transform_6, window_bounds = array<i64: 8, 16>}, {transform_indices = @transform_7, window_bounds = array<i64: 8, 16>}, {transform_indices = @transform_8, window_bounds = array<i64: 8, 16>}]} {
    %c0 = arith.constant 0 : index
    %c0_0 = arith.constant 0 : index
    %0 = vector.load %arg1[%c0, %c0_0] : memref<8x32xbf16, #tpu.memory_space<vmem>>, vector<8x32xbf16>
    %c0_1 = arith.constant 0 : index
    %c0_2 = arith.constant 0 : index
    %1 = vector.load %arg2[%c0_1, %c0_2] : memref<32x96xbf16, #tpu.memory_space<vmem>>, vector<32x96xbf16>
    %c0_3 = arith.constant 0 : index
    %c0_4 = arith.constant 0 : index
    %2 = vector.load %arg3[%c0_3, %c0_4] : memref<1x96xf32, #tpu.memory_space<vmem>>, vector<1x96xf32>
    %cst = arith.constant dense<0.000000e+00> : vector<8x96xf32>
    %3 = tpu.matmul %0, %1, %cst {dimension_numbers = #tpu.dot_dimension_numbers<[1], [0], [0], [1], [0, 0, 1, 1], [], []>} : vector<8x32xbf16>, vector<32x96xbf16>, vector<8x96xf32> -> vector<8x96xf32>
    %4 = vector.broadcast %2 : vector<1x96xf32> to vector<8x96xf32>
    %5 = arith.addf %3, %4 : vector<8x96xf32>
    %6 = vector.extract_strided_slice %5 {offsets = [0, 0], sizes = [8, 16], strides = [1, 1]} : vector<8x96xf32> to vector<8x16xf32>
    %cst_5 = arith.constant dense<0xFF800000> : vector<8xf32>
    %7 = vector.multi_reduction <maximumf>, %6, %cst_5 [1] : vector<8x16xf32> to vector<8xf32>
    %8 = vector.shape_cast %7 : vector<8xf32> to vector<8x1xf32>
    %9 = vector.broadcast %8 : vector<8x1xf32> to vector<8x16xf32>
    %10 = arith.subf %6, %9 : vector<8x16xf32>
    %11 = math.exp %10 : vector<8x16xf32>
    %cst_6 = arith.constant dense<0.000000e+00> : vector<8xf32>
    %12 = vector.multi_reduction <add>, %11, %cst_6 [1] : vector<8x16xf32> to vector<8xf32>
    %13 = vector.shape_cast %12 : vector<8xf32> to vector<8x1xf32>
    %14 = vector.broadcast %13 : vector<8x1xf32> to vector<8x16xf32>
    %15 = arith.divf %11, %14 : vector<8x16xf32>
    %c0_7 = arith.constant 0 : index
    %c0_8 = arith.constant 0 : index
    %16 = vector.load %arg4[%c0_7, %c0_8] : memref<8x16xf32, #tpu.memory_space<vmem>>, vector<8x16xf32>
    tpu.vector_store %arg4[%c0_7, %c0_8], %15 {strides = array<i32>} : memref<8x16xf32, #tpu.memory_space<vmem>>, vector<8x16xf32>,
    %17 = vector.extract_strided_slice %5 {offsets = [0, 16], sizes = [8, 16], strides = [1, 1]} : vector<8x96xf32> to vector<8x16xf32>
    %cst_9 = arith.constant dense<0xFF800000> : vector<16xf32>
    %18 = vector.multi_reduction <maximumf>, %17, %cst_9 [0] : vector<8x16xf32> to vector<16xf32>
    %19 = vector.shape_cast %18 : vector<16xf32> to vector<1x16xf32>
    %20 = vector.broadcast %19 : vector<1x16xf32> to vector<8x16xf32>
    %21 = arith.subf %17, %20 : vector<8x16xf32>
    %22 = math.exp %21 : vector<8x16xf32>
    %cst_10 = arith.constant dense<0.000000e+00> : vector<16xf32>
    %23 = vector.multi_reduction <add>, %22, %cst_10 [0] : vector<8x16xf32> to vector<16xf32>
    %24 = vector.shape_cast %23 : vector<16xf32> to vector<1x16xf32>
    %25 = vector.broadcast %24 : vector<1x16xf32> to vector<8x16xf32>
    %26 = arith.divf %22, %25 : vector<8x16xf32>
    %c0_11 = arith.constant 0 : index
    %c0_12 = arith.constant 0 : index
    %27 = vector.load %arg5[%c0_11, %c0_12] : memref<8x16xf32, #tpu.memory_space<vmem>>, vector<8x16xf32>
    tpu.vector_store %arg5[%c0_11, %c0_12], %26 {strides = array<i32>} : memref<8x16xf32, #tpu.memory_space<vmem>>, vector<8x16xf32>,
    %28 = vector.extract_strided_slice %5 {offsets = [0, 32], sizes = [8, 16], strides = [1, 1]} : vector<8x96xf32> to vector<8x16xf32>
    %cst_13 = arith.constant dense<0xFF800000> : vector<8xf32>
    %29 = vector.multi_reduction <maximumf>, %28, %cst_13 [1] : vector<8x16xf32> to vector<8xf32>
    %30 = vector.shape_cast %29 : vector<8xf32> to vector<8x1xf32>
    %31 = vector.broadcast %30 : vector<8x1xf32> to vector<8x16xf32>
    %32 = arith.subf %28, %31 : vector<8x16xf32>
    %33 = math.exp %32 : vector<8x16xf32>
    %cst_14 = arith.constant dense<0.000000e+00> : vector<8xf32>
    %34 = vector.multi_reduction <add>, %33, %cst_14 [1] : vector<8x16xf32> to vector<8xf32>
    %35 = vector.shape_cast %34 : vector<8xf32> to vector<8x1xf32>
    %36 = vector.broadcast %35 : vector<8x1xf32> to vector<8x16xf32>
    %37 = arith.divf %33, %36 : vector<8x16xf32>
    %c0_15 = arith.constant 0 : index
    %c0_16 = arith.constant 0 : index
    %38 = vector.load %arg6[%c0_15, %c0_16] : memref<8x16xf32, #tpu.memory_space<vmem>>, vector<8x16xf32>
    tpu.vector_store %arg6[%c0_15, %c0_16], %37 {strides = array<i32>} : memref<8x16xf32, #tpu.memory_space<vmem>>, vector<8x16xf32>,
    %39 = vector.extract_strided_slice %5 {offsets = [0, 48], sizes = [8, 16], strides = [1, 1]} : vector<8x96xf32> to vector<8x16xf32>
    %40 = arith.negf %39 : vector<8x16xf32>
    %41 = math.exp %40 : vector<8x16xf32>
    %cst_17 = arith.constant 1.000000e+00 : f32
    %42 = vector.broadcast %cst_17 : f32 to vector<8x16xf32>
    %43 = arith.addf %42, %41 : vector<8x16xf32>
    %44 = arith.divf %42, %43 : vector<8x16xf32>
    %c0_18 = arith.constant 0 : index
    %c0_19 = arith.constant 0 : index
    %45 = vector.load %arg7[%c0_18, %c0_19] : memref<8x16xf32, #tpu.memory_space<vmem>>, vector<8x16xf32>
    tpu.vector_store %arg7[%c0_18, %c0_19], %44 {strides = array<i32>} : memref<8x16xf32, #tpu.memory_space<vmem>>, vector<8x16xf32>,
    %46 = vector.extract_strided_slice %5 {offsets = [0, 64], sizes = [8, 16], strides = [1, 1]} : vector<8x96xf32> to vector<8x16xf32>
    %cst_20 = arith.constant dense<0xFF800000> : vector<8xf32>
    %47 = vector.multi_reduction <maximumf>, %46, %cst_20 [1] : vector<8x16xf32> to vector<8xf32>
    %48 = vector.shape_cast %47 : vector<8xf32> to vector<8x1xf32>
    %49 = vector.broadcast %48 : vector<8x1xf32> to vector<8x16xf32>
    %50 = arith.subf %46, %49 : vector<8x16xf32>
    %51 = math.exp %50 : vector<8x16xf32>
    %cst_21 = arith.constant dense<0.000000e+00> : vector<8xf32>
    %52 = vector.multi_reduction <add>, %51, %cst_21 [1] : vector<8x16xf32> to vector<8xf32>
    %53 = vector.shape_cast %52 : vector<8xf32> to vector<8x1xf32>
    %54 = vector.broadcast %53 : vector<8x1xf32> to vector<8x16xf32>
    %55 = arith.divf %51, %54 : vector<8x16xf32>
    %c0_22 = arith.constant 0 : index
    %c0_23 = arith.constant 0 : index
    %56 = vector.load %arg8[%c0_22, %c0_23] : memref<8x16xf32, #tpu.memory_space<vmem>>, vector<8x16xf32>
    tpu.vector_store %arg8[%c0_22, %c0_23], %55 {strides = array<i32>} : memref<8x16xf32, #tpu.memory_space<vmem>>, vector<8x16xf32>,
    %57 = vector.extract_strided_slice %5 {offsets = [0, 80], sizes = [8, 16], strides = [1, 1]} : vector<8x96xf32> to vector<8x16xf32>
    %58 = arith.negf %57 : vector<8x16xf32>
    %59 = math.exp %58 : vector<8x16xf32>
    %cst_24 = arith.constant 1.000000e+00 : f32
    %60 = vector.broadcast %cst_24 : f32 to vector<8x16xf32>
    %61 = arith.addf %60, %59 : vector<8x16xf32>
    %62 = arith.divf %60, %61 : vector<8x16xf32>
    %c0_25 = arith.constant 0 : index
    %c0_26 = arith.constant 0 : index
    %63 = vector.load %arg9[%c0_25, %c0_26] : memref<8x16xf32, #tpu.memory_space<vmem>>, vector<8x16xf32>
    tpu.vector_store %arg9[%c0_25, %c0_26], %62 {strides = array<i32>} : memref<8x16xf32, #tpu.memory_space<vmem>>, vector<8x16xf32>,
    return
  }
  func.func @transform_0(%arg0: i32) -> (i32, i32) {
    %c0_i32 = arith.constant 0 : i32
    %c0_i32_0 = arith.constant 0 : i32
    return %arg0, %c0_i32 : i32, i32
  }
  func.func @transform_1(%arg0: i32) -> (i32, i32) {
    %c0_i32 = arith.constant 0 : i32
    %c0_i32_0 = arith.constant 0 : i32
    %c0_i32_1 = arith.constant 0 : i32
    return %c0_i32, %c0_i32_0 : i32, i32
  }
  func.func @transform_2(%arg0: i32) -> (i32, i32) {
    %c0_i32 = arith.constant 0 : i32
    %c0_i32_0 = arith.constant 0 : i32
    %c0_i32_1 = arith.constant 0 : i32
    return %c0_i32, %c0_i32_0 : i32, i32
  }
  func.func @transform_3(%arg0: i32) -> (i32, i32) {
    %c0_i32 = arith.constant 0 : i32
    %c0_i32_0 = arith.constant 0 : i32
    return %arg0, %c0_i32 : i32, i32
  }
  func.func @transform_4(%arg0: i32) -> (i32, i32) {
    %c0_i32 = arith.constant 0 : i32
    %c0_i32_0 = arith.constant 0 : i32
    return %arg0, %c0_i32 : i32, i32
  }
  func.func @transform_5(%arg0: i32) -> (i32, i32) {
    %c0_i32 = arith.constant 0 : i32
    %c0_i32_0 = arith.constant 0 : i32
    return %arg0, %c0_i32 : i32, i32
  }
  func.func @transform_6(%arg0: i32) -> (i32, i32) {
    %c0_i32 = arith.constant 0 : i32
    %c0_i32_0 = arith.constant 0 : i32
    return %arg0, %c0_i32 : i32, i32
  }
  func.func @transform_7(%arg0: i32) -> (i32, i32) {
    %c0_i32 = arith.constant 0 : i32
    %c0_i32_0 = arith.constant 0 : i32
    return %arg0, %c0_i32 : i32, i32
  }
  func.func @transform_8(%arg0: i32) -> (i32, i32) {
    %c0_i32 = arith.constant 0 : i32
    %c0_i32_0 = arith.constant 0 : i32
    return %arg0, %c0_i32 : i32, i32
  }
}

</mosaic_0001>

<llo_original>
// kernel: cls_iou_forward.1
$region0: #{cls_iou_forward.1}
  #allocation0 [shape = 'u32[]', space=smem, size = 0x4, offset = 0x4, fixed_abs, tag = 'smem constant byte address 0x4 - core index']
  #allocation1 [shape = 'u32[144,128]{1,0:T(1,128)}', space=vmem, size = 0x12000, scoped, tag = 'internal scratch']
  %s0 = inlined_call_operand.vmem [shape: bf16[8,32], index: 0, kind: input, shape index: {}]
  %s1 = inlined_call_operand.hbm [shape: bf16[32,96], index: 1, kind: input, shape index: {}]
  %s2 = inlined_call_operand.vmem [shape: f32[1,96], index: 2, kind: input, shape index: {}]
  %s3 = inlined_call_operand.hbm [shape: f32[8,16], index: 3, kind: output, shape index: {0}]
  %s4 = inlined_call_operand.hbm [shape: f32[8,16], index: 4, kind: output, shape index: {1}]
  %s5 = inlined_call_operand.hbm [shape: f32[8,16], index: 5, kind: output, shape index: {2}]
  %s6 = inlined_call_operand.hbm [shape: f32[8,16], index: 6, kind: output, shape index: {3}]
  %s7 = inlined_call_operand.hbm [shape: f32[8,16], index: 7, kind: output, shape index: {4}]
  %s8 = inlined_call_operand.hbm [shape: f32[8,16], index: 8, kind: output, shape index: {5}]
  %9 = xla_tuple %s3, %s4, %s5, %s6, %s7, %s8
  %s10 = sld [smem:[#allocation0]]
  $region66: #{cls_iou_forward.1} parent=0
    _
  %s12 = ssub.s32 1, %s10
  %s13 = scalar_select 0, %s12, %s10
  $region1: #{cls_iou_forward.1} parent=0
    #allocation2 [shape = 'u8[8192]{0}', space=vmem, size = 0x2000, scoped, tag = 'input window, operand 1, single buffered']
    #allocation3 [shape = 's32[1]{0}', space=sflag, size = 0x4, scoped, tag = 'scoped memory for cls_iou_forward.1']
    #allocation4 [shape = 's32[1]{0}', space=sflag, size = 0x4, scoped, tag = 'scoped memory for cls_iou_forward.1']
    #allocation5 [shape = 'u8[4096]{0}', space=vmem, size = 0x1000, scoped, tag = 'output window, operand 0, single buffered']
    #allocation6 [shape = 'u8[4096]{0}', space=vmem, size = 0x1000, scoped, tag = 'output window, operand 1, single buffered']
    #allocation7 [shape = 's32[1]{0}', space=sflag, size = 0x4, scoped, tag = 'scoped memory for cls_iou_forward.1']
    #allocation8 [shape = 'u8[4096]{0}', space=vmem, size = 0x1000, scoped, tag = 'output window, operand 2, single buffered']
    #allocation9 [shape = 'u8[4096]{0}', space=vmem, size = 0x1000, scoped, tag = 'output window, operand 3, single buffered']
    #allocation10 [shape = 's32[1]{0}', space=sflag, size = 0x4, scoped, tag = 'scoped memory for cls_iou_forward.1']
    #allocation11 [shape = 'u8[4096]{0}', space=vmem, size = 0x1000, scoped, tag = 'output window, operand 4, single buffered']
    #allocation12 [shape = 'u8[4096]{0}', space=vmem, size = 0x1000, scoped, tag = 'output window, operand 5, single buffered']
    #allocation13 [shape = 's32[1]{0}', space=sflag, size = 0x4, scoped, tag = 'scoped memory for cls_iou_forward.1']
    %14 = vsyncpa [#allocation3], 0
    %15 = vsyncpa [#allocation4], 0
    %16 = vsyncpa [#allocation7], 0
    %17 = vsyncpa [#allocation10], 0
    %18 = vsyncpa [#allocation13], 0
    // Predicated region
    $region2: #{cls_iou_forward.1} parent=1 // pred_check
      _
    $region3: #{cls_iou_forward.1} parent=1 // pred_check_branch
      %20 = sbr.rel (0) target = $region5
    $region4: #{cls_iou_forward.1} parent=1 // pred_region
      _
    $region5: #{cls_iou_forward.1} parent=1 // pred_fallthru
      _
    // Predicated region
    $region6: #{cls_iou_forward.1} parent=1 // pred_check
      _
    $region7: #{cls_iou_forward.1} parent=1 // pred_check_branch
      %22 = sbr.rel (0) target = $region9
    $region8: #{cls_iou_forward.1} parent=1 // pred_region
      %s24 = ssub.s32 256, 256
      %25 = vsyncadd [#allocation3], %s24
      %s26 = sshll.u32 [#allocation2], 4
      %s27 = int_to_ptr.vmem [resolvable:$true] %s26
      %32 = dma.hbm_to_vmem [thread:$0]  %s1, 256, %s27, [#allocation3], 64, 64, 4
    $region9: #{cls_iou_forward.1} parent=1 // pred_fallthru
      _
    // Predicated region
    $region10: #{cls_iou_forward.1} parent=1 // pred_check
      _
    $region11: #{cls_iou_forward.1} parent=1 // pred_check_branch
      %34 = sbr.rel (0) target = $region13
    $region12: #{cls_iou_forward.1} parent=1 // pred_region
      _
    $region13: #{cls_iou_forward.1} parent=1 // pred_fallthru
      _
    // Predicated region
    $region14: #{cls_iou_forward.1} parent=1 // pred_check
      _
    $region15: #{cls_iou_forward.1} parent=1 // pred_check_branch
      %36 = sbr.rel (0) target = $region17
    $region16: #{cls_iou_forward.1} parent=1 // pred_region
      %37 = dma.done [#allocation3], 256
    $region17: #{cls_iou_forward.1} parent=1 // pred_fallthru
      _
    %v39 = vld [vmem:[%s0] sm:$0xf]
    %v40 = vld [vmem:[#allocation2] sm:$0xf]
    %v41 = vld [vmem:[#allocation2 + $0x4] sm:$0xf]
    %v42 = vld [vmem:[#allocation2 + $0x8] sm:$0xf]
    %v43 = vld [vmem:[#allocation2 + $0xc] sm:$0xf]
    %v44 = vld [vmem:[%s2] sm:$0x1]
    %v46 = vlaneseq
    %v47 = vshrl.u32 %v46, 7
    %v48 = vsub.s32 0, %v47
    %v49 = vrot.slane %v44, %v48
    %v55 = vunpack.c.l.b16 %v40
    %v56 = vunpack.c.l.b16 %v41
    %v57 = vunpack.c.l.b16 %v42
    %v58 = vunpack.c.l.b16 %v43
    %v59 = vpack.c.b16 %v56, %v55
    %v60 = vpack.c.b16 %v58, %v57
    %vm63 = vcmask 261120
    %v65 = vsel %vm63, %v39, 0
    %67 = vmatprep.subr.bf16.mxu0 0
    %68 = vmatpush1.bf16.msra.mxu0 0
    %69 = vmatprep.subr.bf16.mxu0 0
    %70 = vmatpush1.bf16.msra.mxu0 0
    %71 = vmatprep.subr.bf16.mxu0 0
    %72 = vmatpush1.bf16.msra.mxu0 0
    %73 = vmatprep.subr.bf16.mxu0 0
    %74 = vmatpush1.bf16.msra.mxu0 0
    %75 = vmatprep.subr.bf16.mxu0 0
    %76 = vmatpush1.bf16.msra.mxu0 0
    %77 = vmatprep.subr.bf16.mxu0 0
    %78 = vmatpush1.bf16.msra.mxu0 0
    %79 = vmatprep.subr.bf16.mxu0 0
    %80 = vmatpush1.bf16.msra.mxu0 %v60
    %81 = vmatprep.subr.bf16.mxu0 0
    %82 = vmatpush1.bf16.msra.mxu0 %v59
    %83 = vmatprep.subr.bf16.mxu0 0
    %84 = vmatpush2.bf16.msra.mxu0 0
    %85 = vmatprep.subr.bf16.mxu0 0
    %86 = vmatpush2.bf16.msra.mxu0 0
    %87 = vmatprep.subr.bf16.mxu0 0
    %88 = vmatpush2.bf16.msra.mxu0 0
    %89 = vmatprep.subr.bf16.mxu0 0
    %90 = vmatpush2.bf16.msra.mxu0 0
    %91 = vmatprep.subr.bf16.mxu0 0
    %92 = vmatpush2.bf16.msra.mxu0 0
    %93 = vmatprep.subr.bf16.mxu0 0
    %94 = vmatpush2.bf16.msra.mxu0 0
    %95 = vmatprep.subr.bf16.mxu0 0
    %96 = vmatpush2.bf16.msra.mxu0 0
    %97 = vmatprep.subr.bf16.mxu0 0
    %98 = vmatpush2.bf16.msra.mxu0 0
    %99 = vmatprep.mubr.bf16.mxu0 0
    %100 = vmatmul.mubr.bf16.gmra.mxu0 %v65
    %v101 = vpop.f32.mrf.mxu0
    %v102 = vadd.f32 %v49, %v101
    %v103 = vpop.f32.mrf.mxu0
    %v104 = vpop.f32.mrf.mxu0
    %v105 = vpop.f32.mrf.mxu0
    %106 = vdwg.mxu0
    %vm107 = vcmask 130048
    %v108 = vsel %vm107, %v102, -inf
    %109 = vmax.xlane.f32.xlu0 %v108
    %v110 = vpop.xlane.xlu0 %109
    %v111 = vsub.f32 %v102, %v110
    %v112 = vmul.f32 %v111, 1.442695
    %v113 = vpow.pop %v112
    %v114 = vsel %vm107, %v113, 0.0
    %115 = vadd.xlane.f32.xlu0 %v114
    %v116 = vpop.xlane.xlu0 %115
    %v117 = vrcp.pop %v116
    %v118 = vmul.f32 %v113, %v117
    %119 = vst.msk [vmem:[#allocation5] sm:$0xff] %vm107, %v118
    %vm120 = vcmask 261248
    %v121 = vsel %vm120, %v102, -inf
    %v122 = vrot.slane %v121, 4
    %v123 = vmax.f32 %v121, %v122
    %v124 = vrot.slane %v123, 2
    %v125 = vmax.f32 %v123, %v124
    %v126 = vrot.slane %v125, 1
    %v127 = vmax.f32 %v125, %v126
    %v128 = vsub.f32 %v102, %v127
    %v129 = vmul.f32 %v128, 1.442695
    %v130 = vpow.pop %v129
    %v131 = vsel %vm120, %v130, 0.0
    %v132 = vrot.slane %v131, 4
    %v133 = vadd.f32 %v131, %v132
    %v134 = vrot.slane %v133, 2
    %v135 = vadd.f32 %v133, %v134
    %v136 = vrot.slane %v135, 1
    %v137 = vadd.f32 %v135, %v136
    %v138 = vrcp.pop %v137
    %v139 = vmul.f32 %v130, %v138
    %141 = vrot.lane.b32.xlu0 %v139, 112
    %v142 = vpop.permute.xlu0 %141
    %144 = vst.msk [vmem:[#allocation6] sm:$0xff] %vm107, %v142
    %vm145 = vcmask 392448
    %v146 = vsel %vm145, %v102, -inf
    %147 = vmax.xlane.f32.xlu0 %v146
    %v148 = vpop.xlane.xlu0 %147
    %v149 = vsub.f32 %v102, %v148
    %v150 = vmul.f32 %v149, 1.442695
    %v151 = vpow.pop %v150
    %153 = vrot.lane.b32.xlu0 %v151, 96
    %v154 = vpop.permute.xlu0 %153
    %v156 = vsel %vm107, %v154, 0.0
    %157 = vadd.xlane.f32.xlu0 %v156
    %v158 = vpop.xlane.xlu0 %157
    %v159 = vrcp.pop %v158
    %v160 = vmul.f32 %v151, %v159
    %162 = vrot.lane.b32.xlu0 %v160, 96
    %v163 = vpop.permute.xlu0 %162
    %165 = vst.msk [vmem:[#allocation8] sm:$0xff] %vm107, %v163
    %v166 = vxor.u32 %v102, 2147483648
    %v167 = vmul.f32 %v166, 1.442695
    %v168 = vpow.pop %v167
    %v169 = vadd.f32 %v168, 1.0
    %v170 = vrcp.pop %v169
    %v171 = vmul.f32 1.0, %v170
    %173 = vrot.lane.b32.xlu0 %v171, 80
    %v174 = vpop.permute.xlu0 %173
    %176 = vst.msk [vmem:[#allocation9] sm:$0xff] %vm107, %v174
    %vm177 = vcmask 654848
    %v178 = vsel %vm177, %v102, -inf
    %179 = vmax.xlane.f32.xlu0 %v178
    %v180 = vpop.xlane.xlu0 %179
    %v181 = vsub.f32 %v102, %v180
    %v182 = vmul.f32 %v181, 1.442695
    %v183 = vpow.pop %v182
    %185 = vrot.lane.b32.xlu0 %v183, 64
    %v186 = vpop.permute.xlu0 %185
    %v188 = vsel %vm107, %v186, 0.0
    %189 = vadd.xlane.f32.xlu0 %v188
    %v190 = vpop.xlane.xlu0 %189
    %v191 = vrcp.pop %v190
    %v192 = vmul.f32 %v183, %v191
    %194 = vrot.lane.b32.xlu0 %v192, 64
    %v195 = vpop.permute.xlu0 %194
    %197 = vst.msk [vmem:[#allocation11] sm:$0xff] %vm107, %v195
    %198 = vrot.lane.b32.xlu0 %v171, 48
    %v199 = vpop.permute.xlu0 %198
    %201 = vst.msk [vmem:[#allocation12] sm:$0xff] %vm107, %v199
    // Predicated region
    $region18: #{cls_iou_forward.1} parent=1 // pred_check
      _
    $region19: #{cls_iou_forward.1} parent=1 // pred_check_branch
      %203 = sbr.rel (0) target = $region21
    $region20: #{cls_iou_forward.1} parent=1 // pred_region
      %s205 = ssub.s32 128, 128
      %206 = vsyncadd [#allocation4], %s205
      %s208 = sshll.u32 [#allocation5], 4
      %s209 = int_to_ptr.vmem [resolvable:$true] %s208
      %211 = dma.vmem_to_hbm [thread:$0]  %s209, 128, %s3, [#allocation4]
    $region21: #{cls_iou_forward.1} parent=1 // pred_fallthru
      _
    // Predicated region
    $region22: #{cls_iou_forward.1} parent=1 // pred_check
      _
    $region23: #{cls_iou_forward.1} parent=1 // pred_check_branch
      %213 = sbr.rel (0) target = $region25
    $region24: #{cls_iou_forward.1} parent=1 // pred_region
      %s215 = ssub.s32 128, 128
      %216 = vsyncadd [#allocation7], %s215
      %s218 = sshll.u32 [#allocation6], 4
      %s219 = int_to_ptr.vmem [resolvable:$true] %s218
      %221 = dma.vmem_to_hbm [thread:$0]  %s219, 128, %s4, [#allocation7]
    $region25: #{cls_iou_forward.1} parent=1 // pred_fallthru
      _
    // Predicated region
    $region26: #{cls_iou_forward.1} parent=1 // pred_check
      _
    $region27: #{cls_iou_forward.1} parent=1 // pred_check_branch
      %223 = sbr.rel (0) target = $region29
    $region28: #{cls_iou_forward.1} parent=1 // pred_region
      %s225 = ssub.s32 128, 128
      %226 = vsyncadd [#allocation7], %s225
      %s228 = sshll.u32 [#allocation8], 4
      %s229 = int_to_ptr.vmem [resolvable:$true] %s228
      %231 = dma.vmem_to_hbm [thread:$0]  %s229, 128, %s5, [#allocation7]
    $region29: #{cls_iou_forward.1} parent=1 // pred_fallthru
      _
    // Predicated region
    $region30: #{cls_iou_forward.1} parent=1 // pred_check
      _
    $region31: #{cls_iou_forward.1} parent=1 // pred_check_branch
      %233 = sbr.rel (0) target = $region33
    $region32: #{cls_iou_forward.1} parent=1 // pred_region
      %s235 = ssub.s32 128, 128
      %236 = vsyncadd [#allocation10], %s235
      %s238 = sshll.u32 [#allocation9], 4
      %s239 = int_to_ptr.vmem [resolvable:$true] %s238
      %241 = dma.vmem_to_hbm [thread:$0]  %s239, 128, %s6, [#allocation10]
    $region33: #{cls_iou_forward.1} parent=1 // pred_fallthru
      _
    // Predicated region
    $region34: #{cls_iou_forward.1} parent=1 // pred_check
      _
    $region35: #{cls_iou_forward.1} parent=1 // pred_check_branch
      %243 = sbr.rel (0) target = $region37
    $region36: #{cls_iou_forward.1} parent=1 // pred_region
      %s245 = ssub.s32 128, 128
      %246 = vsyncadd [#allocation10], %s245
      %s248 = sshll.u32 [#allocation11], 4
      %s249 = int_to_ptr.vmem [resolvable:$true] %s248
      %251 = dma.vmem_to_hbm [thread:$0]  %s249, 128, %s7, [#allocation10]
    $region37: #{cls_iou_forward.1} parent=1 // pred_fallthru
      _
    // Predicated region
    $region38: #{cls_iou_forward.1} parent=1 // pred_check
      _
    $region39: #{cls_iou_forward.1} parent=1 // pred_check_branch
      %253 = sbr.rel (0) target = $region41
    $region40: #{cls_iou_forward.1} parent=1 // pred_region
      %s255 = ssub.s32 128, 128
      %256 = vsyncadd [#allocation13], %s255
      %s258 = sshll.u32 [#allocation12], 4
      %s259 = int_to_ptr.vmem [resolvable:$true] %s258
      %261 = dma.vmem_to_hbm [thread:$0]  %s259, 128, %s8, [#allocation13]
    $region41: #{cls_iou_forward.1} parent=1 // pred_fallthru
      _
    // Predicated region
    $region42: #{cls_iou_forward.1} parent=1 // pred_check
      _
    $region43: #{cls_iou_forward.1} parent=1 // pred_check_branch
      %263 = sbr.rel (0) target = $region45
    $region44: #{cls_iou_forward.1} parent=1 // pred_region
      %264 = dma.done [#allocation4], 128
    $region45: #{cls_iou_forward.1} parent=1 // pred_fallthru
      _
    // Predicated region
    $region46: #{cls_iou_forward.1} parent=1 // pred_check
      _
    $region47: #{cls_iou_forward.1} parent=1 // pred_check_branch
      %266 = sbr.rel (0) target = $region49
    $region48: #{cls_iou_forward.1} parent=1 // pred_region
      %267 = dma.done [#allocation7], 128
    $region49: #{cls_iou_forward.1} parent=1 // pred_fallthru
      _
    // Predicated region
    $region50: #{cls_iou_forward.1} parent=1 // pred_check
      _
    $region51: #{cls_iou_forward.1} parent=1 // pred_check_branch
      %269 = sbr.rel (0) target = $region53
    $region52: #{cls_iou_forward.1} parent=1 // pred_region
      %270 = dma.done [#allocation7], 128
    $region53: #{cls_iou_forward.1} parent=1 // pred_fallthru
      _
    // Predicated region
    $region54: #{cls_iou_forward.1} parent=1 // pred_check
      _
    $region55: #{cls_iou_forward.1} parent=1 // pred_check_branch
      %272 = sbr.rel (0) target = $region57
    $region56: #{cls_iou_forward.1} parent=1 // pred_region
      %273 = dma.done [#allocation10], 128
    $region57: #{cls_iou_forward.1} parent=1 // pred_fallthru
      _
    // Predicated region
    $region58: #{cls_iou_forward.1} parent=1 // pred_check
      _
    $region59: #{cls_iou_forward.1} parent=1 // pred_check_branch
      %275 = sbr.rel (0) target = $region61
    $region60: #{cls_iou_forward.1} parent=1 // pred_region
      %276 = dma.done [#allocation10], 128
    $region61: #{cls_iou_forward.1} parent=1 // pred_fallthru
      _
    // Predicated region
    $region62: #{cls_iou_forward.1} parent=1 // pred_check
      _
    $region63: #{cls_iou_forward.1} parent=1 // pred_check_branch
      %278 = sbr.rel (0) target = $region65
    $region64: #{cls_iou_forward.1} parent=1 // pred_region
      %279 = dma.done [#allocation13], 128
    $region65: #{cls_iou_forward.1} parent=1 // pred_fallthru
      _
    %280 = vsyncpa [#allocation3], 1
    %281 = vsyncpa [#allocation4], 1
    %282 = vsyncpa [#allocation7], 1
    %283 = vsyncpa [#allocation10], 1
    %284 = vsyncpa [#allocation13], 1

</llo_original>
